<compile_context>
chip_gen: v6e
topology: v6e:2x2x1
jax: 0.10.0
libtpu: 0.0.40
codegen_flags: <defaults>
</compile_context>

<pallas_src>
import math

import jax
import jax.numpy as jnp
from jax.experimental import pallas as pl
from jax.experimental.pallas import tpu as pltpu


def _round_up(n: int, m: int) -> int:
    return ((n + m - 1) // m) * m


def _pad2(a, rows: int, cols: int):
    return jnp.pad(a, ((0, rows - a.shape[0]), (0, cols - a.shape[1])))


def _pad_row(b, cols: int):
    b = b.reshape(1, -1)
    return jnp.pad(b, ((0, 0), (0, cols - b.shape[-1])))


# --------------------------------------------------------------------------
# Kernel: one batch tile, all four layers fused, activations stay in VMEM.
# --------------------------------------------------------------------------
def _altnet_kernel(xy_ref, w1_ref, b1_ref, w2_ref, b2_ref, w3_ref, b3_ref,
                   w4_ref, b4_ref, out_ref):
    f32 = jnp.float32
    bf16 = jnp.bfloat16

    # fc1 over the concat (fused in the wrapper): [TB, Dxy] @ [Dxy, Hp].
    h1 = jnp.dot(xy_ref[...], w1_ref[...], preferred_element_type=f32)
    inter = jnp.maximum(h1 + b1_ref[...], 0.0)

    # residual block 2 — bf16 MXU operands, f32 accumulation & elementwise.
    h2 = jnp.dot(inter.astype(bf16), w2_ref[...],
                 preferred_element_type=f32) + b2_ref[...]
    inter = inter + jnp.maximum(h2, 0.0)

    # residual block 3
    h3 = jnp.dot(inter.astype(bf16), w3_ref[...],
                 preferred_element_type=f32) + b3_ref[...]
    inter = inter + jnp.maximum(h3, 0.0)

    # fc4 — 1-wide output: VPU multiply + cross-lane (XLU) reduce, off the
    # MXU.  Padded hidden lanes of w4 are zero, so they contribute nothing.
    h4 = jnp.sum(inter * w4_ref[...], axis=-1, keepdims=True) + b4_ref[0, 0]
    out_ref[...] = h4.astype(out_ref.dtype)


# --------------------------------------------------------------------------
# Wrapper: layout (concat / transpose / pad / cast) done once here.
# Weights are given in PyTorch nn.Linear layout: W[out_features, in_features].
# --------------------------------------------------------------------------
def altnet_forward(x, y, w1, b1, w2, b2, w3, b3, w4, b4, *, batch_block=1024):
    B, Dx = x.shape
    Dy = y.shape[1]
    Dxy = Dx + Dy
    H = w1.shape[0]
    Hp = _round_up(H, 128)          # hidden width padded to the lane granule

    # ---- weights / biases: transpose to [in, out], zero-pad, cast ---------
    w1p = _pad2(jnp.asarray(w1, jnp.float32).T, Dxy, Hp).astype(jnp.bfloat16)
    b1p = _pad_row(jnp.asarray(b1, jnp.float32), Hp)
    w2p = _pad2(jnp.asarray(w2, jnp.float32).T, Hp, Hp).astype(jnp.bfloat16)
    b2p = _pad_row(jnp.asarray(b2, jnp.float32), Hp)
    w3p = _pad2(jnp.asarray(w3, jnp.float32).T, Hp, Hp).astype(jnp.bfloat16)
    b3p = _pad_row(jnp.asarray(b3, jnp.float32), Hp)
    w4p = _pad2(jnp.asarray(w4, jnp.float32).reshape(1, -1), 1, Hp)   # f32 row
    b4s = jnp.asarray(b4, jnp.float32).reshape(1, 1)                  # scalar (SMEM)

    # ---- batch tiling ------------------------------------------------------
    # TB must be a multiple of 8 (sublane granule); when the batch is split
    # into several tiles it is also a multiple of 128.  For B >= 256 we force
    # at least two grid steps so v7x's second TensorCore gets work (no-op on
    # v5e/v6e, which have one TC per chip).
    batch_block = _round_up(max(int(batch_block), 128), 128)
    if B < 256:
        TB = _round_up(B, 8)                 # single tile covers padded batch
    else:
        TB = min(batch_block, _round_up(pl.cdiv(B, 2), 128))
    Bp = _round_up(B, TB)
    nb = Bp // TB

    # ---- inputs: fuse the channel concat, cast MXU operands to bf16 --------
    xy = jnp.concatenate([x.astype(jnp.bfloat16), y.astype(jnp.bfloat16)],
                         axis=1)
    if Bp != B:
        # TODO(synk): for very large non-tile-aligned B, mask the ragged tail
        # in-kernel instead of padding (saves one extra HBM pass over xy).
        xy = jnp.pad(xy, ((0, Bp - B), (0, 0)))

    grid_spec = pltpu.PrefetchScalarGridSpec(
        num_scalar_prefetch=0,
        grid=(nb,),
        in_specs=[
            pl.BlockSpec((TB, Dxy), lambda b: (b, 0)),   # xy tile (bf16)
            pl.BlockSpec((Dxy, Hp), lambda b: (0, 0)),   # W1 (resident, bf16)
            pl.BlockSpec((1, Hp),   lambda b: (0, 0)),   # b1 (f32)
            pl.BlockSpec((Hp, Hp),  lambda b: (0, 0)),   # W2 (bf16)
            pl.BlockSpec((1, Hp),   lambda b: (0, 0)),   # b2
            pl.BlockSpec((Hp, Hp),  lambda b: (0, 0)),   # W3 (bf16)
            pl.BlockSpec((1, Hp),   lambda b: (0, 0)),   # b3
            pl.BlockSpec((1, Hp),   lambda b: (0, 0)),   # w4 row (f32)
            pl.BlockSpec(memory_space=pltpu.MemorySpace.SMEM),  # b4 scalar
        ],
        out_specs=pl.BlockSpec((TB, 1), lambda b: (b, 0)),
    )

    out_padded = pl.pallas_call(
        _altnet_kernel,
        out_shape=jax.ShapeDtypeStruct((Bp, 1), jnp.float32),
        grid_spec=grid_spec,
        compiler_params=pltpu.CompilerParams(
            dimension_semantics=("parallel",),
        ),
    )(xy, w1p, b1p, w2p, b2p, w3p, b3p, w4p, b4s)

    return out_padded[:B]          # strip batch padding; shape [B, 1]


# --------------------------------------------------------------------------
# Pure-JAX reference (mirrors the PyTorch forward exactly, f32).
# --------------------------------------------------------------------------
def altnet_reference(x, y, w1, b1, w2, b2, w3, b3, w4, b4):
    xy = jnp.concatenate([x, y], axis=1)
    inter = jax.nn.relu(xy @ w1.T + b1)
    inter = inter + jax.nn.relu(inter @ w2.T + b2)
    inter = inter + jax.nn.relu(inter @ w3.T + b3)
    return inter @ w4.T + b4


if __name__ == "__main__":
    key = jax.random.PRNGKey(0)
    B, x_dim, y_dim, H = 8, 4, 4, 100
    keys = jax.random.split(key, 6)

    x = jax.random.normal(keys[0], (B, x_dim), jnp.float32)
    y = jax.random.normal(keys[1], (B, y_dim), jnp.float32)

    def init_linear(k, fan_in, fan_out):
        kw, kb = jax.random.split(k)
        bound = 1.0 / math.sqrt(fan_in)
        w = jax.random.uniform(kw, (fan_out, fan_in), jnp.float32, -bound, bound)
        b = jax.random.uniform(kb, (fan_out,), jnp.float32, -bound, bound)
        return w, b

    w1, b1 = init_linear(keys[2], x_dim + y_dim, H)
    w2, b2 = init_linear(keys[3], H, H)
    w3, b3 = init_linear(keys[4], H, H)
    w4, b4 = init_linear(keys[5], H, 1)

    out = altnet_forward(x, y, w1, b1, w2, b2, w3, b3, w4, b4)
    out = jax.block_until_ready(out)

    ref = altnet_reference(x, y, w1, b1, w2, b2, w3, b3, w4, b4)
    ref = jax.block_until_ready(ref)

    max_err = float(jnp.max(jnp.abs(out - ref)))
    if not bool(jnp.allclose(out, ref, rtol=1e-2, atol=1e-2)):
        raise RuntimeError(
            f"Pallas AltNet mismatch vs reference, max |err| = {max_err}")

    print("KERNEL_OK")
</pallas_src>

<mosaic_0001>
module attributes {stable_mosaic.version = 11 : i64} {
  func.func @_altnet_kernel(%arg0: i32, %arg1: memref<8x8xbf16, #tpu.memory_space<vmem>>, %arg2: memref<8x128xbf16, #tpu.memory_space<vmem>>, %arg3: memref<1x128xf32, #tpu.memory_space<vmem>>, %arg4: memref<128x128xbf16, #tpu.memory_space<vmem>>, %arg5: memref<1x128xf32, #tpu.memory_space<vmem>>, %arg6: memref<128x128xbf16, #tpu.memory_space<vmem>>, %arg7: memref<1x128xf32, #tpu.memory_space<vmem>>, %arg8: memref<1x128xf32, #tpu.memory_space<vmem>>, %arg9: memref<1x1xf32, #tpu.memory_space<smem>>, %arg10: memref<8x1xf32, #tpu.memory_space<vmem>>) attributes {dimension_semantics = [#tpu.dimension_semantics<parallel>], iteration_bounds = array<i64: 1>, scalar_prefetch = 0 : i64, scratch_operands = 0 : i64, tpu.core_type = #tpu.core_type<tc>, window_params = [{transform_indices = @transform_0, window_bounds = array<i64: 8, 8>}, {pipeline_mode = #tpu.pipeline_mode<synchronous>, transform_indices = @transform_1, window_bounds = array<i64: 8, 128>}, {pipeline_mode = #tpu.pipeline_mode<synchronous>, transform_indices = @transform_2, window_bounds = array<i64: 1, 128>}, {pipeline_mode = #tpu.pipeline_mode<synchronous>, transform_indices = @transform_3, window_bounds = array<i64: 128, 128>}, {pipeline_mode = #tpu.pipeline_mode<synchronous>, transform_indices = @transform_4, window_bounds = array<i64: 1, 128>}, {pipeline_mode = #tpu.pipeline_mode<synchronous>, transform_indices = @transform_5, window_bounds = array<i64: 128, 128>}, {pipeline_mode = #tpu.pipeline_mode<synchronous>, transform_indices = @transform_6, window_bounds = array<i64: 1, 128>}, {pipeline_mode = #tpu.pipeline_mode<synchronous>, transform_indices = @transform_7, window_bounds = array<i64: 1, 128>}, {transform_indices = @transform_8, window_bounds = array<i64: 1, 1>}, {transform_indices = @transform_9, window_bounds = array<i64: 8, 1>}]} {
    %c0 = arith.constant 0 : index
    %c0_0 = arith.constant 0 : index
    %0 = vector.load %arg1[%c0, %c0_0] : memref<8x8xbf16, #tpu.memory_space<vmem>>, vector<8x8xbf16>
    %c0_1 = arith.constant 0 : index
    %c0_2 = arith.constant 0 : index
    %1 = vector.load %arg2[%c0_1, %c0_2] : memref<8x128xbf16, #tpu.memory_space<vmem>>, vector<8x128xbf16>
    %cst = arith.constant dense<0.000000e+00> : vector<8x128xf32>
    %2 = tpu.matmul %0, %1, %cst {dimension_numbers = #tpu.dot_dimension_numbers<[1], [0], [0], [1], [0, 0, 1, 1], [], []>} : vector<8x8xbf16>, vector<8x128xbf16>, vector<8x128xf32> -> vector<8x128xf32>
    %c0_3 = arith.constant 0 : index
    %c0_4 = arith.constant 0 : index
    %3 = vector.load %arg3[%c0_3, %c0_4] : memref<1x128xf32, #tpu.memory_space<vmem>>, vector<1x128xf32>
    %4 = vector.broadcast %3 : vector<1x128xf32> to vector<8x128xf32>
    %5 = arith.addf %2, %4 : vector<8x128xf32>
    %cst_5 = arith.constant 0.000000e+00 : f32
    %6 = vector.broadcast %cst_5 : f32 to vector<8x128xf32>
    %7 = arith.maximumf %5, %6 : vector<8x128xf32>
    %8 = arith.truncf %7 : vector<8x128xf32> to vector<8x128xbf16>
    %c0_6 = arith.constant 0 : index
    %c0_7 = arith.constant 0 : index
    %9 = vector.load %arg4[%c0_6, %c0_7] : memref<128x128xbf16, #tpu.memory_space<vmem>>, vector<128x128xbf16>
    %cst_8 = arith.constant dense<0.000000e+00> : vector<8x128xf32>
    %10 = tpu.matmul %8, %9, %cst_8 {dimension_numbers = #tpu.dot_dimension_numbers<[1], [0], [0], [1], [0, 0, 1, 1], [], []>} : vector<8x128xbf16>, vector<128x128xbf16>, vector<8x128xf32> -> vector<8x128xf32>
    %c0_9 = arith.constant 0 : index
    %c0_10 = arith.constant 0 : index
    %11 = vector.load %arg5[%c0_9, %c0_10] : memref<1x128xf32, #tpu.memory_space<vmem>>, vector<1x128xf32>
    %12 = vector.broadcast %11 : vector<1x128xf32> to vector<8x128xf32>
    %13 = arith.addf %10, %12 : vector<8x128xf32>
    %cst_11 = arith.constant 0.000000e+00 : f32
    %14 = vector.broadcast %cst_11 : f32 to vector<8x128xf32>
    %15 = arith.maximumf %13, %14 : vector<8x128xf32>
    %16 = arith.addf %7, %15 : vector<8x128xf32>
    %17 = arith.truncf %16 : vector<8x128xf32> to vector<8x128xbf16>
    %c0_12 = arith.constant 0 : index
    %c0_13 = arith.constant 0 : index
    %18 = vector.load %arg6[%c0_12, %c0_13] : memref<128x128xbf16, #tpu.memory_space<vmem>>, vector<128x128xbf16>
    %cst_14 = arith.constant dense<0.000000e+00> : vector<8x128xf32>
    %19 = tpu.matmul %17, %18, %cst_14 {dimension_numbers = #tpu.dot_dimension_numbers<[1], [0], [0], [1], [0, 0, 1, 1], [], []>} : vector<8x128xbf16>, vector<128x128xbf16>, vector<8x128xf32> -> vector<8x128xf32>
    %c0_15 = arith.constant 0 : index
    %c0_16 = arith.constant 0 : index
    %20 = vector.load %arg7[%c0_15, %c0_16] : memref<1x128xf32, #tpu.memory_space<vmem>>, vector<1x128xf32>
    %21 = vector.broadcast %20 : vector<1x128xf32> to vector<8x128xf32>
    %22 = arith.addf %19, %21 : vector<8x128xf32>
    %cst_17 = arith.constant 0.000000e+00 : f32
    %23 = vector.broadcast %cst_17 : f32 to vector<8x128xf32>
    %24 = arith.maximumf %22, %23 : vector<8x128xf32>
    %25 = arith.addf %16, %24 : vector<8x128xf32>
    %c0_18 = arith.constant 0 : index
    %c0_19 = arith.constant 0 : index
    %26 = vector.load %arg8[%c0_18, %c0_19] : memref<1x128xf32, #tpu.memory_space<vmem>>, vector<1x128xf32>
    %27 = vector.broadcast %26 : vector<1x128xf32> to vector<8x128xf32>
    %28 = arith.mulf %25, %27 : vector<8x128xf32>
    %cst_20 = arith.constant dense<0.000000e+00> : vector<8xf32>
    %29 = vector.multi_reduction <add>, %28, %cst_20 [1] : vector<8x128xf32> to vector<8xf32>
    %30 = vector.shape_cast %29 : vector<8xf32> to vector<8x1xf32>
    %c0_21 = arith.constant 0 : index
    %c0_22 = arith.constant 0 : index
    %31 = memref.load %arg9[%c0_21, %c0_22] : memref<1x1xf32, #tpu.memory_space<smem>>
    %32 = vector.broadcast %31 : f32 to vector<8x1xf32>
    %33 = arith.addf %30, %32 : vector<8x1xf32>
    %c0_23 = arith.constant 0 : index
    %c0_24 = arith.constant 0 : index
    %34 = vector.load %arg10[%c0_23, %c0_24] : memref<8x1xf32, #tpu.memory_space<vmem>>, vector<8x1xf32>
    tpu.vector_store %arg10[%c0_23, %c0_24], %33 {strides = array<i32>} : memref<8x1xf32, #tpu.memory_space<vmem>>, vector<8x1xf32>,
    return
  }
  func.func @transform_0(%arg0: i32) -> (i32, i32) {
    %c0_i32 = arith.constant 0 : i32
    %c0_i32_0 = arith.constant 0 : i32
    return %arg0, %c0_i32 : i32, i32
  }
  func.func @transform_1(%arg0: i32) -> (i32, i32) {
    %c0_i32 = arith.constant 0 : i32
    %c0_i32_0 = arith.constant 0 : i32
    %c0_i32_1 = arith.constant 0 : i32
    return %c0_i32, %c0_i32_0 : i32, i32
  }
  func.func @transform_2(%arg0: i32) -> (i32, i32) {
    %c0_i32 = arith.constant 0 : i32
    %c0_i32_0 = arith.constant 0 : i32
    %c0_i32_1 = arith.constant 0 : i32
    return %c0_i32, %c0_i32_0 : i32, i32
  }
  func.func @transform_3(%arg0: i32) -> (i32, i32) {
    %c0_i32 = arith.constant 0 : i32
    %c0_i32_0 = arith.constant 0 : i32
    %c0_i32_1 = arith.constant 0 : i32
    return %c0_i32, %c0_i32_0 : i32, i32
  }
  func.func @transform_4(%arg0: i32) -> (i32, i32) {
    %c0_i32 = arith.constant 0 : i32
    %c0_i32_0 = arith.constant 0 : i32
    %c0_i32_1 = arith.constant 0 : i32
    return %c0_i32, %c0_i32_0 : i32, i32
  }
  func.func @transform_5(%arg0: i32) -> (i32, i32) {
    %c0_i32 = arith.constant 0 : i32
    %c0_i32_0 = arith.constant 0 : i32
    %c0_i32_1 = arith.constant 0 : i32
    return %c0_i32, %c0_i32_0 : i32, i32
  }
  func.func @transform_6(%arg0: i32) -> (i32, i32) {
    %c0_i32 = arith.constant 0 : i32
    %c0_i32_0 = arith.constant 0 : i32
    %c0_i32_1 = arith.constant 0 : i32
    return %c0_i32, %c0_i32_0 : i32, i32
  }
  func.func @transform_7(%arg0: i32) -> (i32, i32) {
    %c0_i32 = arith.constant 0 : i32
    %c0_i32_0 = arith.constant 0 : i32
    %c0_i32_1 = arith.constant 0 : i32
    return %c0_i32, %c0_i32_0 : i32, i32
  }
  func.func @transform_8(%arg0: i32) -> (i32, i32) {
    %c0_i32 = arith.constant 0 : i32
    %c0_i32_0 = arith.constant 0 : i32
    %c0_i32_1 = arith.constant 0 : i32
    return %c0_i32, %c0_i32_0 : i32, i32
  }
  func.func @transform_9(%arg0: i32) -> (i32, i32) {
    %c0_i32 = arith.constant 0 : i32
    %c0_i32_0 = arith.constant 0 : i32
    return %arg0, %c0_i32 : i32, i32
  }
}

</mosaic_0001>

<llo_original>
// kernel: tpu_custom_call.1
$region0: #{tpu_custom_call.1}
  #allocation0 [shape = 'u32[]', space=smem, size = 0x4, offset = 0x4, fixed_abs, tag = 'smem constant byte address 0x4 - core index']
  #allocation1 [shape = 'u32[144,128]{1,0:T(1,128)}', space=vmem, size = 0x12000, scoped, tag = 'internal scratch']
  #allocation2 [shape = 'f32[1,1]{1,0:T(1,128)S(6)}', space=smem, size = 0x200, scoped, tag = 'scoped memory for tpu_custom_call.1']
  %s0 = inlined_call_operand.hbm [shape: bf16[8,8], index: 0, kind: input, shape index: {}]
  %s1 = inlined_call_operand.hbm [shape: bf16[8,128], index: 1, kind: input, shape index: {}]
  %s2 = inlined_call_operand.vmem [shape: f32[1,128], index: 2, kind: input, shape index: {}]
  %s3 = inlined_call_operand.hbm [shape: bf16[128,128], index: 3, kind: input, shape index: {}]
  %s4 = inlined_call_operand.vmem [shape: f32[1,128], index: 4, kind: input, shape index: {}]
  %s5 = inlined_call_operand.hbm [shape: bf16[128,128], index: 5, kind: input, shape index: {}]
  %s6 = inlined_call_operand.vmem [shape: f32[1,128], index: 6, kind: input, shape index: {}]
  %s7 = inlined_call_operand.vmem [shape: f32[1,128], index: 7, kind: input, shape index: {}]
  %s8 = inlined_call_operand.<no memory space> [shape: f32[1,1], index: 8, kind: input, shape index: {}]
  %s9 = inlined_call_operand.vmem [shape: f32[8,1], index: 9, kind: output, shape index: {}]
  %s10 = sld [smem:[#allocation0]]
  $region62: #{tpu_custom_call.1} parent=0
    _
  %s12 = ssub.s32 1, %s10
  %s13 = scalar_select 0, %s12, %s10
  %14 = sst [smem:[#allocation2]] %s8
  $region1: #{tpu_custom_call.1} parent=0
    #allocation3 [shape = 'u8[2048]{0}', space=vmem, size = 0x800, scoped, tag = 'input window, operand 0, single buffered']
    #allocation4 [shape = 's32[1]{0}', space=sflag, size = 0x4, scoped, tag = 'scoped memory for tpu_custom_call.1']
    #allocation5 [shape = 'u8[2048]{0}', space=vmem, size = 0x800, scoped, tag = 'input window, operand 1, single buffered']
    #allocation6 [shape = 's32[1]{0}', space=sflag, size = 0x4, scoped, tag = 'scoped memory for tpu_custom_call.1']
    #allocation7 [shape = 'u8[32768]{0}', space=vmem, size = 0x8000, scoped, tag = 'input window, operand 3, single buffered']
    #allocation8 [shape = 'u8[32768]{0}', space=vmem, size = 0x8000, scoped, tag = 'input window, operand 5, single buffered']
    #allocation9 [shape = 's32[1]{0}', space=sflag, size = 0x4, scoped, tag = 'scoped memory for tpu_custom_call.1']
    %15 = vsyncpa [#allocation4], 0
    %16 = vsyncpa [#allocation6], 0
    %17 = vsyncpa [#allocation9], 0
    // Predicated region
    $region2: #{tpu_custom_call.1} parent=1 // pred_check
      _
    $region3: #{tpu_custom_call.1} parent=1 // pred_check_branch
      %19 = sbr.rel (0) target = $region5
    $region4: #{tpu_custom_call.1} parent=1 // pred_region
      %s21 = ssub.s32 64, 64
      %22 = vsyncadd [#allocation4], %s21
      %s24 = sshll.u32 [#allocation3], 4
      %s25 = int_to_ptr.vmem [resolvable:$true] %s24
      %27 = dma.hbm_to_vmem [thread:$0]  %s0, 64, %s25, [#allocation4]
    $region5: #{tpu_custom_call.1} parent=1 // pred_fallthru
      _
    // Predicated region
    $region6: #{tpu_custom_call.1} parent=1 // pred_check
      _
    $region7: #{tpu_custom_call.1} parent=1 // pred_check_branch
      %29 = sbr.rel (0) target = $region9
    $region8: #{tpu_custom_call.1} parent=1 // pred_region
      %s31 = ssub.s32 64, 64
      %32 = vsyncadd [#allocation6], %s31
      %s34 = sshll.u32 [#allocation5], 4
      %s35 = int_to_ptr.vmem [resolvable:$true] %s34
      %37 = dma.hbm_to_vmem [thread:$0]  %s1, 64, %s35, [#allocation6]
    $region9: #{tpu_custom_call.1} parent=1 // pred_fallthru
      _
    // Predicated region
    $region10: #{tpu_custom_call.1} parent=1 // pred_check
      _
    $region11: #{tpu_custom_call.1} parent=1 // pred_check_branch
      %39 = sbr.rel (0) target = $region13
    $region12: #{tpu_custom_call.1} parent=1 // pred_region
      _
    $region13: #{tpu_custom_call.1} parent=1 // pred_fallthru
      _
    // Predicated region
    $region14: #{tpu_custom_call.1} parent=1 // pred_check
      _
    $region15: #{tpu_custom_call.1} parent=1 // pred_check_branch
      %41 = sbr.rel (0) target = $region17
    $region16: #{tpu_custom_call.1} parent=1 // pred_region
      %s43 = ssub.s32 1024, 1024
      %44 = vsyncadd [#allocation6], %s43
      %s45 = sshll.u32 [#allocation7], 4
      %s46 = int_to_ptr.vmem [resolvable:$true] %s45
      %51 = dma.hbm_to_vmem [thread:$0]  %s3, 1024, %s46, [#allocation6], 64, 64, 4
    $region17: #{tpu_custom_call.1} parent=1 // pred_fallthru
      _
    // Predicated region
    $region18: #{tpu_custom_call.1} parent=1 // pred_check
      _
    $region19: #{tpu_custom_call.1} parent=1 // pred_check_branch
      %53 = sbr.rel (0) target = $region21
    $region20: #{tpu_custom_call.1} parent=1 // pred_region
      _
    $region21: #{tpu_custom_call.1} parent=1 // pred_fallthru
      _
    // Predicated region
    $region22: #{tpu_custom_call.1} parent=1 // pred_check
      _
    $region23: #{tpu_custom_call.1} parent=1 // pred_check_branch
      %55 = sbr.rel (0) target = $region25
    $region24: #{tpu_custom_call.1} parent=1 // pred_region
      %s57 = ssub.s32 1024, 1024
      %58 = vsyncadd [#allocation9], %s57
      %s59 = sshll.u32 [#allocation8], 4
      %s60 = int_to_ptr.vmem [resolvable:$true] %s59
      %65 = dma.hbm_to_vmem [thread:$0]  %s5, 1024, %s60, [#allocation9], 64, 64, 4
    $region25: #{tpu_custom_call.1} parent=1 // pred_fallthru
      _
    // Predicated region
    $region26: #{tpu_custom_call.1} parent=1 // pred_check
      _
    $region27: #{tpu_custom_call.1} parent=1 // pred_check_branch
      %67 = sbr.rel (0) target = $region29
    $region28: #{tpu_custom_call.1} parent=1 // pred_region
      _
    $region29: #{tpu_custom_call.1} parent=1 // pred_fallthru
      _
    // Predicated region
    $region30: #{tpu_custom_call.1} parent=1 // pred_check
      _
    $region31: #{tpu_custom_call.1} parent=1 // pred_check_branch
      %69 = sbr.rel (0) target = $region33
    $region32: #{tpu_custom_call.1} parent=1 // pred_region
      _
    $region33: #{tpu_custom_call.1} parent=1 // pred_fallthru
      _
    // Predicated region
    $region34: #{tpu_custom_call.1} parent=1 // pred_check
      _
    $region35: #{tpu_custom_call.1} parent=1 // pred_check_branch
      %71 = sbr.rel (0) target = $region37
    $region36: #{tpu_custom_call.1} parent=1 // pred_region
      _
    $region37: #{tpu_custom_call.1} parent=1 // pred_fallthru
      _
    // Predicated region
    $region38: #{tpu_custom_call.1} parent=1 // pred_check
      _
    $region39: #{tpu_custom_call.1} parent=1 // pred_check_branch
      %73 = sbr.rel (0) target = $region41
    $region40: #{tpu_custom_call.1} parent=1 // pred_region
      %74 = dma.done [#allocation4], 64
    $region41: #{tpu_custom_call.1} parent=1 // pred_fallthru
      _
    // Predicated region
    $region42: #{tpu_custom_call.1} parent=1 // pred_check
      _
    $region43: #{tpu_custom_call.1} parent=1 // pred_check_branch
      %76 = sbr.rel (0) target = $region45
    $region44: #{tpu_custom_call.1} parent=1 // pred_region
      %77 = dma.done [#allocation6], 64
    $region45: #{tpu_custom_call.1} parent=1 // pred_fallthru
      _
    // Predicated region
    $region46: #{tpu_custom_call.1} parent=1 // pred_check
      _
    $region47: #{tpu_custom_call.1} parent=1 // pred_check_branch
      %79 = sbr.rel (0) target = $region49
    $region48: #{tpu_custom_call.1} parent=1 // pred_region
      %80 = dma.done [#allocation6], 1024
    $region49: #{tpu_custom_call.1} parent=1 // pred_fallthru
      _
    // Predicated region
    $region50: #{tpu_custom_call.1} parent=1 // pred_check
      _
    $region51: #{tpu_custom_call.1} parent=1 // pred_check_branch
      %82 = sbr.rel (0) target = $region53
    $region52: #{tpu_custom_call.1} parent=1 // pred_region
      %83 = dma.done [#allocation9], 1024
    $region53: #{tpu_custom_call.1} parent=1 // pred_fallthru
      _
    %v85 = vld [vmem:[#allocation3] sm:$0xf]
    %v86 = vld [vmem:[#allocation5] sm:$0xf]
    %v87 = vld [vmem:[%s2] sm:$0x1]
    %v89 = vlaneseq
    %v90 = vshrl.u32 %v89, 7
    %v91 = vsub.s32 0, %v90
    %v92 = vrot.slane %v87, %v91
    %vm94 = vcmask 64512
    %v96 = vsel %vm94, %v85, 0
    %vm98 = vcmask 1043456
    %v100 = vsel %vm98, %v86, 0
    %102 = vmatprep.subr.bf16.mxu0 0
    %103 = vmatpush1.bf16.msra.mxu0 0
    %104 = vmatprep.subr.bf16.mxu0 0
    %105 = vmatpush1.bf16.msra.mxu0 0
    %106 = vmatprep.subr.bf16.mxu0 0
    %107 = vmatpush1.bf16.msra.mxu0 0
    %108 = vmatprep.subr.bf16.mxu0 0
    %109 = vmatpush1.bf16.msra.mxu0 0
    %110 = vmatprep.subr.bf16.mxu0 0
    %111 = vmatpush1.bf16.msra.mxu0 0
    %112 = vmatprep.subr.bf16.mxu0 0
    %113 = vmatpush1.bf16.msra.mxu0 0
    %114 = vmatprep.subr.bf16.mxu0 0
    %115 = vmatpush1.bf16.msra.mxu0 0
    %116 = vmatprep.subr.bf16.mxu0 0
    %117 = vmatpush1.bf16.msra.mxu0 %v100
    %118 = vmatprep.subr.bf16.mxu0 0
    %119 = vmatpush2.bf16.msra.mxu0 0
    %120 = vmatprep.subr.bf16.mxu0 0
    %121 = vmatpush2.bf16.msra.mxu0 0
    %122 = vmatprep.subr.bf16.mxu0 0
    %123 = vmatpush2.bf16.msra.mxu0 0
    %124 = vmatprep.subr.bf16.mxu0 0
    %125 = vmatpush2.bf16.msra.mxu0 0
    %126 = vmatprep.subr.bf16.mxu0 0
    %127 = vmatpush2.bf16.msra.mxu0 0
    %128 = vmatprep.subr.bf16.mxu0 0
    %129 = vmatpush2.bf16.msra.mxu0 0
    %130 = vmatprep.subr.bf16.mxu0 0
    %131 = vmatpush2.bf16.msra.mxu0 0
    %132 = vmatprep.subr.bf16.mxu0 0
    %133 = vmatpush2.bf16.msra.mxu0 0
    %134 = vmatprep.mubr.bf16.mxu0 0
    %135 = vmatmul.mubr.bf16.gmra.mxu0 %v96
    %v136 = vpop.f32.mrf.mxu0
    %v137 = vadd.f32 %v92, %v136
    %v138 = vpop.f32.mrf.mxu0
    %v139 = vpop.f32.mrf.mxu0
    %v140 = vpop.f32.mrf.mxu0
    %141 = vdwg.mxu0
    %v142 = vmax.f32 %v137, 0.0
    %v143 = vpack.c.bf16 %v142, %v142
    %v144 = vld [vmem:[#allocation7] sm:$0xf]
    %v145 = vld [vmem:[#allocation7 + $0x4] sm:$0xf]
    %v146 = vld [vmem:[#allocation7 + $0x8] sm:$0xf]
    %v147 = vld [vmem:[#allocation7 + $0xc] sm:$0xf]
    %v148 = vld [vmem:[#allocation7 + $0x10] sm:$0xf]
    %v149 = vld [vmem:[#allocation7 + $0x14] sm:$0xf]
    %v150 = vld [vmem:[#allocation7 + $0x18] sm:$0xf]
    %v151 = vld [vmem:[#allocation7 + $0x1c] sm:$0xf]
    %v152 = vld [vmem:[#allocation7 + $0x20] sm:$0xf]
    %v153 = vld [vmem:[#allocation7 + $0x24] sm:$0xf]
    %v154 = vld [vmem:[#allocation7 + $0x28] sm:$0xf]
    %v155 = vld [vmem:[#allocation7 + $0x2c] sm:$0xf]
    %v156 = vld [vmem:[#allocation7 + $0x30] sm:$0xf]
    %v157 = vld [vmem:[#allocation7 + $0x34] sm:$0xf]
    %v158 = vld [vmem:[#allocation7 + $0x38] sm:$0xf]
    %v159 = vld [vmem:[#allocation7 + $0x3c] sm:$0xf]
    %v160 = vld [vmem:[%s4] sm:$0x1]
    %v162 = vlaneseq
    %v163 = vshrl.u32 %v162, 7
    %v164 = vsub.s32 0, %v163
    %v165 = vrot.slane %v160, %v164
    %v183 = vunpack.c.l.b16 %v144
    %v184 = vunpack.c.l.b16 %v145
    %v185 = vunpack.c.l.b16 %v146
    %v186 = vunpack.c.l.b16 %v147
    %v187 = vunpack.c.l.b16 %v148
    %v188 = vunpack.c.l.b16 %v149
    %v189 = vunpack.c.l.b16 %v150
    %v190 = vunpack.c.l.b16 %v151
    %v191 = vunpack.c.l.b16 %v152
    %v192 = vunpack.c.l.b16 %v153
    %v193 = vunpack.c.l.b16 %v154
    %v194 = vunpack.c.l.b16 %v155
    %v195 = vunpack.c.l.b16 %v156
    %v196 = vunpack.c.l.b16 %v157
    %v197 = vunpack.c.l.b16 %v158
    %v198 = vunpack.c.l.b16 %v159
    %v199 = vpack.c.b16 %v184, %v183
    %v200 = vpack.c.b16 %v186, %v185
    %v201 = vpack.c.b16 %v188, %v187
    %v202 = vpack.c.b16 %v190, %v189
    %v203 = vpack.c.b16 %v192, %v191
    %v204 = vpack.c.b16 %v194, %v193
    %v205 = vpack.c.b16 %v196, %v195
    %v206 = vpack.c.b16 %v198, %v197
    %215 = vmatprep.subr.bf16.mxu0 0
    %216 = vmatpush1.bf16.msra.mxu0 %v206
    %217 = vmatprep.subr.bf16.mxu0 0
    %218 = vmatpush1.bf16.msra.mxu0 %v205
    %219 = vmatprep.subr.bf16.mxu0 0
    %220 = vmatpush1.bf16.msra.mxu0 %v204
    %221 = vmatprep.subr.bf16.mxu0 0
    %222 = vmatpush1.bf16.msra.mxu0 %v203
    %223 = vmatprep.subr.bf16.mxu0 0
    %224 = vmatpush1.bf16.msra.mxu0 %v202
    %225 = vmatprep.subr.bf16.mxu0 0
    %226 = vmatpush1.bf16.msra.mxu0 %v201
    %227 = vmatprep.subr.bf16.mxu0 0
    %228 = vmatpush1.bf16.msra.mxu0 %v200
    %229 = vmatprep.subr.bf16.mxu0 0
    %230 = vmatpush1.bf16.msra.mxu0 %v199
    %231 = vmatprep.subr.bf16.mxu0 0
    %232 = vmatpush2.bf16.msra.mxu0 0
    %233 = vmatprep.subr.bf16.mxu0 0
    %234 = vmatpush2.bf16.msra.mxu0 0
    %235 = vmatprep.subr.bf16.mxu0 0
    %236 = vmatpush2.bf16.msra.mxu0 0
    %237 = vmatprep.subr.bf16.mxu0 0
    %238 = vmatpush2.bf16.msra.mxu0 0
    %239 = vmatprep.subr.bf16.mxu0 0
    %240 = vmatpush2.bf16.msra.mxu0 0
    %241 = vmatprep.subr.bf16.mxu0 0
    %242 = vmatpush2.bf16.msra.mxu0 0
    %243 = vmatprep.subr.bf16.mxu0 0
    %244 = vmatpush2.bf16.msra.mxu0 0
    %245 = vmatprep.subr.bf16.mxu0 0
    %246 = vmatpush2.bf16.msra.mxu0 0
    %247 = vmatprep.mubr.bf16.mxu0 0
    %248 = vmatmul.mubr.bf16.gmra.mxu0 %v143
    %v249 = vpop.f32.mrf.mxu0
    %v250 = vadd.f32 %v165, %v249
    %v251 = vpop.f32.mrf.mxu0
    %v252 = vpop.f32.mrf.mxu0
    %v253 = vpop.f32.mrf.mxu0
    %254 = vdwg.mxu0
    %v255 = vmax.f32 %v250, 0.0
    %v256 = vadd.f32 %v142, %v255
    %v257 = vpack.c.bf16 %v256, %v256
    %v258 = vld [vmem:[#allocation8] sm:$0xf]
    %v259 = vld [vmem:[#allocation8 + $0x4] sm:$0xf]
    %v260 = vld [vmem:[#allocation8 + $0x8] sm:$0xf]
    %v261 = vld [vmem:[#allocation8 + $0xc] sm:$0xf]
    %v262 = vld [vmem:[#allocation8 + $0x10] sm:$0xf]
    %v263 = vld [vmem:[#allocation8 + $0x14] sm:$0xf]
    %v264 = vld [vmem:[#allocation8 + $0x18] sm:$0xf]
    %v265 = vld [vmem:[#allocation8 + $0x1c] sm:$0xf]
    %v266 = vld [vmem:[#allocation8 + $0x20] sm:$0xf]
    %v267 = vld [vmem:[#allocation8 + $0x24] sm:$0xf]
    %v268 = vld [vmem:[#allocation8 + $0x28] sm:$0xf]
    %v269 = vld [vmem:[#allocation8 + $0x2c] sm:$0xf]
    %v270 = vld [vmem:[#allocation8 + $0x30] sm:$0xf]
    %v271 = vld [vmem:[#allocation8 + $0x34] sm:$0xf]
    %v272 = vld [vmem:[#allocation8 + $0x38] sm:$0xf]
    %v273 = vld [vmem:[#allocation8 + $0x3c] sm:$0xf]
    %v274 = vld [vmem:[%s6] sm:$0x1]
    %v276 = vlaneseq
    %v277 = vshrl.u32 %v276, 7
    %v278 = vsub.s32 0, %v277
    %v279 = vrot.slane %v274, %v278
    %v297 = vunpack.c.l.b16 %v258
    %v298 = vunpack.c.l.b16 %v259
    %v299 = vunpack.c.l.b16 %v260
    %v300 = vunpack.c.l.b16 %v261
    %v301 = vunpack.c.l.b16 %v262
    %v302 = vunpack.c.l.b16 %v263
    %v303 = vunpack.c.l.b16 %v264
    %v304 = vunpack.c.l.b16 %v265
    %v305 = vunpack.c.l.b16 %v266
    %v306 = vunpack.c.l.b16 %v267
    %v307 = vunpack.c.l.b16 %v268
    %v308 = vunpack.c.l.b16 %v269
    %v309 = vunpack.c.l.b16 %v270
    %v310 = vunpack.c.l.b16 %v271
    %v311 = vunpack.c.l.b16 %v272
    %v312 = vunpack.c.l.b16 %v273
    %v313 = vpack.c.b16 %v298, %v297
    %v314 = vpack.c.b16 %v300, %v299
    %v315 = vpack.c.b16 %v302, %v301
    %v316 = vpack.c.b16 %v304, %v303
    %v317 = vpack.c.b16 %v306, %v305
    %v318 = vpack.c.b16 %v308, %v307
    %v319 = vpack.c.b16 %v310, %v309
    %v320 = vpack.c.b16 %v312, %v311
    %329 = vmatprep.subr.bf16.mxu0 0
    %330 = vmatpush1.bf16.msra.mxu0 %v320
    %331 = vmatprep.subr.bf16.mxu0 0
    %332 = vmatpush1.bf16.msra.mxu0 %v319
    %333 = vmatprep.subr.bf16.mxu0 0
    %334 = vmatpush1.bf16.msra.mxu0 %v318
    %335 = vmatprep.subr.bf16.mxu0 0
    %336 = vmatpush1.bf16.msra.mxu0 %v317
    %337 = vmatprep.subr.bf16.mxu0 0
    %338 = vmatpush1.bf16.msra.mxu0 %v316
    %339 = vmatprep.subr.bf16.mxu0 0
    %340 = vmatpush1.bf16.msra.mxu0 %v315
    %341 = vmatprep.subr.bf16.mxu0 0
    %342 = vmatpush1.bf16.msra.mxu0 %v314
    %343 = vmatprep.subr.bf16.mxu0 0
    %344 = vmatpush1.bf16.msra.mxu0 %v313
    %345 = vmatprep.subr.bf16.mxu0 0
    %346 = vmatpush2.bf16.msra.mxu0 0
    %347 = vmatprep.subr.bf16.mxu0 0
    %348 = vmatpush2.bf16.msra.mxu0 0
    %349 = vmatprep.subr.bf16.mxu0 0
    %350 = vmatpush2.bf16.msra.mxu0 0
    %351 = vmatprep.subr.bf16.mxu0 0
    %352 = vmatpush2.bf16.msra.mxu0 0
    %353 = vmatprep.subr.bf16.mxu0 0
    %354 = vmatpush2.bf16.msra.mxu0 0
    %355 = vmatprep.subr.bf16.mxu0 0
    %356 = vmatpush2.bf16.msra.mxu0 0
    %357 = vmatprep.subr.bf16.mxu0 0
    %358 = vmatpush2.bf16.msra.mxu0 0
    %359 = vmatprep.subr.bf16.mxu0 0
    %360 = vmatpush2.bf16.msra.mxu0 0
    %361 = vmatprep.mubr.bf16.mxu0 0
    %362 = vmatmul.mubr.bf16.gmra.mxu0 %v257
    %v363 = vpop.f32.mrf.mxu0
    %v364 = vadd.f32 %v279, %v363
    %v365 = vpop.f32.mrf.mxu0
    %v366 = vpop.f32.mrf.mxu0
    %v367 = vpop.f32.mrf.mxu0
    %368 = vdwg.mxu0
    %v369 = vmax.f32 %v364, 0.0
    %v370 = vadd.f32 %v256, %v369
    %v371 = vld [vmem:[%s7] sm:$0x1]
    %v373 = vlaneseq
    %v374 = vshrl.u32 %v373, 7
    %v375 = vsub.s32 0, %v374
    %v376 = vrot.slane %v371, %v375
    %v378 = vmul.f32 %v370, %v376
    %379 = vadd.xlane.f32.xlu0 %v378
    %v380 = vpop.xlane.xlu0 %379
    %s381 = sld [smem:[#allocation2]]
    %v382 = vstv %s381
    %v383 = vadd.f32 %v380, %v382
    %vm384 = vcmask 7168
    %385 = vst.msk [vmem:[%s9] sm:$0xff] %vm384, %v383
    // Predicated region
    $region54: #{tpu_custom_call.1} parent=1 // pred_check
      _
    $region55: #{tpu_custom_call.1} parent=1 // pred_check_branch
      %387 = sbr.rel (0) target = $region57
    $region56: #{tpu_custom_call.1} parent=1 // pred_region
      _
    $region57: #{tpu_custom_call.1} parent=1 // pred_fallthru
      _
    // Predicated region
    $region58: #{tpu_custom_call.1} parent=1 // pred_check
      _
    $region59: #{tpu_custom_call.1} parent=1 // pred_check_branch
      %389 = sbr.rel (0) target = $region61
    $region60: #{tpu_custom_call.1} parent=1 // pred_region
      _
    $region61: #{tpu_custom_call.1} parent=1 // pred_fallthru
      _
    %390 = vsyncpa [#allocation4], 1
    %391 = vsyncpa [#allocation6], 1
    %392 = vsyncpa [#allocation9], 1

</llo_original>
